<compile_context>
chip_gen: v5e
topology: v5e:2x2
jax: 0.10.0
libtpu: 0.0.40
codegen_flags: <defaults>
</compile_context>

<pallas_src>
import functools

import jax
import jax.numpy as jnp
from jax.experimental import pallas as pl
from jax.experimental.pallas import tpu as pltpu

LRELU_SLOPE = 0.1


def get_padding(kernel_size, dilation=1):
    return int((kernel_size * dilation - dilation) / 2)


# ------------------------------ Pallas kernel ------------------------------ #

def _resblock1_fused_kernel(xm_ref, xh_ref, w1_ref, b1_ref, w2_ref, b2_ref,
                            o_ref, *, kernel_size, dilations, halo, t_len,
                            t_tile):
    """All residual steps of ResBlock1 for one (batch, T-tile) grid point.

    xm_ref : (C, Tt)      main input tile (compute dtype)
    xh_ref : (C, 2*halo)  [left | right] halo; true zeros at global edges
    w1_ref : (S*K, C, C)  conv1 weights per (step, tap), (C_out, C_in)
    b1_ref : (S, C, 1)    conv1 biases (f32)
    w2_ref : (S*K, C, C)  conv2 weights (dilation 1)
    b2_ref : (S, C, 1)    conv2 biases (f32)
    o_ref  : (C, Tt)      output tile after all residual steps
    """
    C, Tt = o_ref.shape
    K = kernel_size
    H = halo
    ti = pl.program_id(1)
    cdt = xm_ref.dtype                       # MXU input dtype (bf16 or f32)

    def lrelu(v):
        return jnp.where(v > 0, v, LRELU_SLOPE * v)

    def edge_mask(v, left_pos):
        # zero columns whose global time position is outside [0, t_len)
        pos = left_pos + jax.lax.broadcasted_iota(jnp.int32, (1, v.shape[-1]), 1)
        return jnp.where((pos >= 0) & (pos < t_len), v, 0.0)

    def kconv(w_ref, step, a, bias, dil, out_w):
        """K-tap dilated conv as f32-accumulated (C,C)@(C,out_w) MXU dots."""
        if C >= 128:
            acc = bias                                           # (C, 1) f32
            for k in range(K):
                acc = acc + jnp.dot(w_ref[step * K + k],
                                    a[:, k * dil:k * dil + out_w],
                                    preferred_element_type=jnp.float32)
            return acc
        # Small C: a single wider dot with taps stacked on the contraction dim.
        wcat = jnp.concatenate([w_ref[step * K + k] for k in range(K)], axis=1)
        scat = jnp.concatenate(
            [a[:, k * dil:k * dil + out_w] for k in range(K)], axis=0)
        return jnp.dot(wcat, scat, preferred_element_type=jnp.float32) + bias

    # (C, Tt + 2H) window of x; boundary halos are true zeros and the ragged
    # [T, Tp) tail of the padded input is zero, so no step-0 edge mask needed.
    x_cur = jnp.concatenate([xh_ref[:, :H], xm_ref[...], xh_ref[:, H:]],
                            axis=-1).astype(jnp.float32)
    left = ti * t_tile - H                   # global position of column 0

    for s, d in enumerate(dilations):
        p1 = (K - 1) // 2 * d
        p2 = (K - 1) // 2
        if s > 0:
            # conv1's "same" padding zero-pads x outside [0, T); after the first
            # residual step the recomputed halo columns there are non-zero.
            x_cur = edge_mask(x_cur, left)
        a = lrelu(x_cur).astype(cdt)
        wi = x_cur.shape[-1] - 2 * p1
        z = kconv(w1_ref, s, a, b1_ref[s], d, wi)                # f32
        u = lrelu(z)
        # conv2's "same" padding zero-pads the *intermediate* outside [0, T).
        u = edge_mask(u, left + p1).astype(cdt)
        wo = wi - 2 * p2
        y = kconv(w2_ref, s, u, b2_ref[s], 1, wo)                # f32
        # residual add on the centered sub-window (f32)
        x_cur = y + x_cur[:, p1 + p2:p1 + p2 + wo]
        left = left + p1 + p2

    o_ref[...] = x_cur.astype(o_ref.dtype)


# -------------------------------- wrapper ----------------------------------- #

def _tile_defaults():
    """Per-generation (t_tile, vmem_limit_bytes) defaults.

    v7x has 64 MiB VMEM per TensorCore -> smaller tiles / tighter limit;
    v5e / v6e have 128 MiB -> bigger tiles to amortize per-grid-step overhead.
    """
    try:
        kind = jax.devices()[0].device_kind.lower()
    except Exception:
        kind = ""
    if "v7" in kind:
        return 512, 40 * 1024 * 1024
    return 1024, 96 * 1024 * 1024


def resblock1_forward(x, params, dilation=(1, 3, 5), t_tile=None,
                      compute_dtype=jnp.bfloat16, vmem_limit_bytes=None):
    """x: (B, C, T); params: [(w1, b1, w2, b2)] per dilation; w: (C, C, K)."""
    B, C, T = x.shape
    S = len(dilation)
    assert len(params) == S
    K = params[0][0].shape[-1]
    H = sum(get_padding(K, d) + get_padding(K, 1) for d in dilation)  # total halo

    d_tile, d_vmem = _tile_defaults()
    if t_tile is None:
        t_tile = d_tile
    if vmem_limit_bytes is None:
        vmem_limit_bytes = d_vmem

    # Lane-dense, balanced time tiling (tile is a multiple of 128).
    nT = max(1, pl.cdiv(T, t_tile))
    Tt = 128 * pl.cdiv(pl.cdiv(T, nT), 128)
    nT = pl.cdiv(T, Tt)
    # v7x megacore: with a single batch prefer an even number of tiles.
    if B == 1 and nT > 1 and nT % 2 == 1:
        Tt2 = 128 * pl.cdiv(pl.cdiv(T, nT + 1), 128)
        if pl.cdiv(T, Tt2) % 2 == 0:
            Tt = Tt2
            nT = pl.cdiv(T, Tt)
    Tp = nT * Tt
    assert H < Tt, "time tile must exceed the total conv halo"

    cdt = jnp.dtype(compute_dtype)
    xc = x.astype(cdt)
    xp = xc if Tp == T else jnp.pad(xc, ((0, 0), (0, 0), (0, Tp - T)))

    # Merged [left | right] halo per (batch, tile): (B*nT, C, 2H).
    if nT > 1:
        zcol = jnp.zeros((B, C, 1, H), cdt)
        lsrc = xp[:, :, :(nT - 1) * Tt].reshape(B, C, nT - 1, Tt)[:, :, :, Tt - H:]
        rsrc = xp[:, :, Tt:].reshape(B, C, nT - 1, Tt)[:, :, :, :H]
        lh = jnp.concatenate([zcol, lsrc], axis=2)               # (B, C, nT, H)
        rh = jnp.concatenate([rsrc, zcol], axis=2)
        halo = jnp.concatenate([lh, rh], axis=-1)                # (B, C, nT, 2H)
        halo = jnp.transpose(halo, (0, 2, 1, 3)).reshape(B * nT, C, 2 * H)
    else:
        halo = jnp.zeros((B * nT, C, 2 * H), cdt)

    # Weights: (C_out, C_in, K) -> per-(step, tap) (C_out, C_in) stacks.
    w1s = jnp.stack([jnp.transpose(p[0], (2, 0, 1)) for p in params])
    w1s = w1s.reshape(S * K, C, C).astype(cdt)
    w2s = jnp.stack([jnp.transpose(p[2], (2, 0, 1)) for p in params])
    w2s = w2s.reshape(S * K, C, C).astype(cdt)
    b1s = jnp.stack([p[1] for p in params]).reshape(S, C, 1).astype(jnp.float32)
    b2s = jnp.stack([p[3] for p in params]).reshape(S, C, 1).astype(jnp.float32)

    kernel = functools.partial(
        _resblock1_fused_kernel, kernel_size=K, dilations=tuple(dilation),
        halo=H, t_len=T, t_tile=Tt)

    flops = 4 * S * B * C * C * K * Tp                          # 2 convs per step
    bytes_accessed = (cdt.itemsize * (B * C * Tp + B * nT * C * 2 * H
                                      + 2 * S * K * C * C)
                      + x.dtype.itemsize * B * C * Tp + 4 * 2 * S * C)

    out = pl.pallas_call(
        kernel,
        out_shape=jax.ShapeDtypeStruct((B, C, Tp), x.dtype),
        grid=(B, nT),
        in_specs=[
            pl.BlockSpec((None, C, Tt), lambda b, ti: (b, 0, ti)),
            pl.BlockSpec((None, C, 2 * H), lambda b, ti: (b * nT + ti, 0, 0)),
            # grid-invariant weight / bias blocks
            pl.BlockSpec((S * K, C, C), lambda b, ti: (0, 0, 0)),
            pl.BlockSpec((S, C, 1), lambda b, ti: (0, 0, 0)),
            pl.BlockSpec((S * K, C, C), lambda b, ti: (0, 0, 0)),
            pl.BlockSpec((S, C, 1), lambda b, ti: (0, 0, 0)),
        ],
        out_specs=pl.BlockSpec((None, C, Tt), lambda b, ti: (b, 0, ti)),
        compiler_params=pltpu.CompilerParams(
            dimension_semantics=("parallel", "parallel"),
            vmem_limit_bytes=vmem_limit_bytes),
        cost_estimate=pl.CostEstimate(flops=flops, transcendentals=0,
                                      bytes_accessed=bytes_accessed),
    )(xp, halo, w1s, b1s, w2s, b2s)

    # Columns >= T of the last tile hold conv-bias garbage by construction; they
    # must be sliced off (never alias / reuse the padded output buffer).
    return out if Tp == T else out[:, :, :T]


# ------------------------------ params / reference --------------------------- #

def make_resblock1_params(key, channels, kernel_size=3, dilation=(1, 3, 5)):
    """Synthetic params with non-trivial weight_norm folding: w = g * v / ||v||."""
    params = []
    for _ in dilation:
        keys = jax.random.split(key, 7)
        key = keys[0]

        def _conv_param(kv, kg, kb):
            v = 0.01 * jax.random.normal(
                kv, (channels, channels, kernel_size), jnp.float32)
            norm = jnp.sqrt(jnp.sum(v * v, axis=(1, 2), keepdims=True) + 1e-12)
            g = norm * jnp.exp(
                0.25 * jax.random.normal(kg, (channels, 1, 1), jnp.float32))
            w = g * v / norm                        # folded effective weight
            b = 0.01 * jax.random.normal(kb, (channels,), jnp.float32)
            return w, b

        w1, b1 = _conv_param(keys[1], keys[2], keys[3])
        w2, b2 = _conv_param(keys[4], keys[5], keys[6])
        params.append((w1, b1, w2, b2))
    return params


def _conv1d_ref(x, w, b, d):
    pad = get_padding(w.shape[-1], d)
    y = jax.lax.conv_general_dilated(
        x, w, window_strides=(1,), padding=[(pad, pad)],
        rhs_dilation=(d,), dimension_numbers=("NCH", "OIH", "NCH"))
    return y + b[None, :, None]


def resblock1_reference(x, params, dilation=(1, 3, 5)):
    for (w1, b1, w2, b2), d in zip(params, dilation):
        xt = jnp.where(x > 0, x, LRELU_SLOPE * x)
        xt = _conv1d_ref(xt, w1, b1, d)
        xt = jnp.where(xt > 0, xt, LRELU_SLOPE * xt)
        xt = _conv1d_ref(xt, w2, b2, 1)
        x = xt + x
    return x


# ----------------------------------- main ------------------------------------ #

if __name__ == "__main__":
    key = jax.random.PRNGKey(0)
    k_x, k_p, k_x2, k_p3, k_x3 = jax.random.split(key, 5)

    # 1) single-tile path: exact f32 check of the fused halo/mask logic.
    B, C, T = 2, 8, 32
    x = jax.random.normal(k_x, (B, C, T), jnp.float32)
    params = make_resblock1_params(k_p, channels=C, kernel_size=3,
                                   dilation=(1, 3, 5))
    out = jax.block_until_ready(
        resblock1_forward(x, params, compute_dtype=jnp.float32))
    ref = resblock1_reference(x, params)
    assert out.shape == (B, C, T)
    err = float(jnp.max(jnp.abs(out - ref)))
    assert err < 1e-4, f"f32 single-tile max abs err = {err}"

    # 2) multi-tile path (cross-tile halos, ragged T): exact f32 check.
    B2, C2, T2 = 2, 8, 400
    x2 = jax.random.normal(k_x2, (B2, C2, T2), jnp.float32)
    out2 = jax.block_until_ready(
        resblock1_forward(x2, params, t_tile=128, compute_dtype=jnp.float32))
    ref2 = resblock1_reference(x2, params)
    assert out2.shape == (B2, C2, T2)
    err2 = float(jnp.max(jnp.abs(out2 - ref2)))
    assert err2 < 1e-4, f"f32 multi-tile max abs err = {err2}"

    # 3) bf16 compute path + accumulated-tap dots (C >= 128).
    B3, C3, T3 = 1, 128, 512
    x3 = jax.random.normal(k_x3, (B3, C3, T3), jnp.float32)
    params3 = make_resblock1_params(k_p3, channels=C3, kernel_size=3,
                                    dilation=(1, 3, 5))
    out3 = jax.block_until_ready(
        resblock1_forward(x3, params3, t_tile=256, compute_dtype=jnp.bfloat16))
    ref3 = resblock1_reference(x3, params3)
    assert out3.shape == (B3, C3, T3)
    err3 = float(jnp.max(jnp.abs(out3 - ref3)))
    assert err3 < 5e-2, f"bf16 max abs err = {err3}"

    print("KERNEL_OK")
</pallas_src>

<mosaic_0001>
module attributes {stable_mosaic.version = 11 : i64} {
  func.func @_resblock1_fused_kernel(%arg0: i32, %arg1: i32, %arg2: memref<1x8x128xf32, #tpu.memory_space<vmem>>, %arg3: memref<1x8x24xf32, #tpu.memory_space<vmem>>, %arg4: memref<9x8x8xf32, #tpu.memory_space<vmem>>, %arg5: memref<3x8x1xf32, #tpu.memory_space<vmem>>, %arg6: memref<9x8x8xf32, #tpu.memory_space<vmem>>, %arg7: memref<3x8x1xf32, #tpu.memory_space<vmem>>, %arg8: memref<1x8x128xf32, #tpu.memory_space<vmem>>) attributes {dimension_semantics = [#tpu.dimension_semantics<parallel>, #tpu.dimension_semantics<parallel>], iteration_bounds = array<i64: 2, 1>, scalar_prefetch = 0 : i64, scratch_operands = 0 : i64, tpu.core_type = #tpu.core_type<tc>, window_params = [{transform_indices = @transform_0, window_bounds = array<i64: 1, 8, 128>}, {transform_indices = @transform_1, window_bounds = array<i64: 1, 8, 24>}, {pipeline_mode = #tpu.pipeline_mode<synchronous>, transform_indices = @transform_2, window_bounds = array<i64: 9, 8, 8>}, {pipeline_mode = #tpu.pipeline_mode<synchronous>, transform_indices = @transform_3, window_bounds = array<i64: 3, 8, 1>}, {pipeline_mode = #tpu.pipeline_mode<synchronous>, transform_indices = @transform_4, window_bounds = array<i64: 9, 8, 8>}, {pipeline_mode = #tpu.pipeline_mode<synchronous>, transform_indices = @transform_5, window_bounds = array<i64: 3, 8, 1>}, {transform_indices = @transform_6, window_bounds = array<i64: 1, 8, 128>}]} {
    %c0 = arith.constant 0 : index
    %c0_0 = arith.constant 0 : index
    %c0_1 = arith.constant 0 : index
    %0 = vector.load %arg3[%c0, %c0_0, %c0_1] : memref<1x8x24xf32, #tpu.memory_space<vmem>>, vector<1x8x12xf32>
    %1 = vector.shape_cast %0 : vector<1x8x12xf32> to vector<8x12xf32>
    %c0_2 = arith.constant 0 : index
    %c0_3 = arith.constant 0 : index
    %c0_4 = arith.constant 0 : index
    %2 = vector.load %arg2[%c0_2, %c0_3, %c0_4] : memref<1x8x128xf32, #tpu.memory_space<vmem>>, vector<1x8x128xf32>
    %3 = vector.shape_cast %2 : vector<1x8x128xf32> to vector<8x128xf32>
    %c0_5 = arith.constant 0 : index
    %c0_6 = arith.constant 0 : index
    %c12 = arith.constant 12 : index
    %4 = vector.load %arg3[%c0_5, %c0_6, %c12] : memref<1x8x24xf32, #tpu.memory_space<vmem>>, vector<1x8x12xf32>
    %5 = vector.shape_cast %4 : vector<1x8x12xf32> to vector<8x12xf32>
    %6 = tpu.concatenate %1, %3, %5 in 1 : vector<8x12xf32>, vector<8x128xf32>, vector<8x12xf32> -> vector<8x152xf32>
    %c128_i32 = arith.constant 128 : i32
    %7 = arith.muli %arg1, %c128_i32 : i32
    %c12_i32 = arith.constant 12 : i32
    %8 = arith.subi %7, %c12_i32 : i32
    %cst = arith.constant 0.000000e+00 : f32
    %9 = vector.broadcast %cst : f32 to vector<8x152xf32>
    %10 = arith.cmpf ogt, %6, %9 : vector<8x152xf32>
    %cst_7 = arith.constant 1.000000e-01 : f32
    %11 = vector.broadcast %cst_7 : f32 to vector<8x152xf32>
    %12 = arith.mulf %11, %6 : vector<8x152xf32>
    %13 = arith.select %10, %6, %12 : vector<8x152xi1>, vector<8x152xf32>
    %c0_8 = arith.constant 0 : index
    %c0_9 = arith.constant 0 : index
    %c0_10 = arith.constant 0 : index
    %14 = vector.load %arg5[%c0_8, %c0_9, %c0_10] : memref<3x8x1xf32, #tpu.memory_space<vmem>>, vector<1x8x1xf32>
    %15 = vector.shape_cast %14 : vector<1x8x1xf32> to vector<8x1xf32>
    %c0_11 = arith.constant 0 : index
    %c0_12 = arith.constant 0 : index
    %c0_13 = arith.constant 0 : index
    %16 = vector.load %arg4[%c0_11, %c0_12, %c0_13] : memref<9x8x8xf32, #tpu.memory_space<vmem>>, vector<1x8x8xf32>
    %17 = vector.shape_cast %16 : vector<1x8x8xf32> to vector<8x8xf32>
    %c1 = arith.constant 1 : index
    %c0_14 = arith.constant 0 : index
    %c0_15 = arith.constant 0 : index
    %18 = vector.load %arg4[%c1, %c0_14, %c0_15] : memref<9x8x8xf32, #tpu.memory_space<vmem>>, vector<1x8x8xf32>
    %19 = vector.shape_cast %18 : vector<1x8x8xf32> to vector<8x8xf32>
    %c2 = arith.constant 2 : index
    %c0_16 = arith.constant 0 : index
    %c0_17 = arith.constant 0 : index
    %20 = vector.load %arg4[%c2, %c0_16, %c0_17] : memref<9x8x8xf32, #tpu.memory_space<vmem>>, vector<1x8x8xf32>
    %21 = vector.shape_cast %20 : vector<1x8x8xf32> to vector<8x8xf32>
    %22 = tpu.concatenate %17, %19, %21 in 1 : vector<8x8xf32>, vector<8x8xf32>, vector<8x8xf32> -> vector<8x24xf32>
    %23 = vector.extract_strided_slice %13 {offsets = [0, 0], sizes = [8, 150], strides = [1, 1]} : vector<8x152xf32> to vector<8x150xf32>
    %24 = vector.extract_strided_slice %13 {offsets = [0, 1], sizes = [8, 150], strides = [1, 1]} : vector<8x152xf32> to vector<8x150xf32>
    %25 = vector.extract_strided_slice %13 {offsets = [0, 2], sizes = [8, 150], strides = [1, 1]} : vector<8x152xf32> to vector<8x150xf32>
    %26 = tpu.concatenate %23, %24, %25 in 0 : vector<8x150xf32>, vector<8x150xf32>, vector<8x150xf32> -> vector<24x150xf32>
    %cst_18 = arith.constant dense<0.000000e+00> : vector<8x150xf32>
    %27 = tpu.matmul %22, %26, %cst_18 {dimension_numbers = #tpu.dot_dimension_numbers<[1], [0], [0], [1], [0, 0, 1, 1], [], []>} : vector<8x24xf32>, vector<24x150xf32>, vector<8x150xf32> -> vector<8x150xf32>
    %28 = vector.broadcast %15 : vector<8x1xf32> to vector<8x150xf32>
    %29 = arith.addf %27, %28 : vector<8x150xf32>
    %cst_19 = arith.constant 0.000000e+00 : f32
    %30 = vector.broadcast %cst_19 : f32 to vector<8x150xf32>
    %31 = arith.cmpf ogt, %29, %30 : vector<8x150xf32>
    %cst_20 = arith.constant 1.000000e-01 : f32
    %32 = vector.broadcast %cst_20 : f32 to vector<8x150xf32>
    %33 = arith.mulf %32, %29 : vector<8x150xf32>
    %34 = arith.select %31, %29, %33 : vector<8x150xi1>, vector<8x150xf32>
    %c1_i32 = arith.constant 1 : i32
    %35 = arith.addi %8, %c1_i32 : i32
    %36 = tpu.iota {dimensions = array<i32: 1>} : vector<1x150xi32>
    %37 = vector.broadcast %35 : i32 to vector<1x150xi32>
    %38 = arith.addi %37, %36 : vector<1x150xi32>
    %c0_i32 = arith.constant 0 : i32
    %39 = vector.broadcast %c0_i32 : i32 to vector<1x150xi32>
    %40 = arith.cmpi sge, %38, %39 : vector<1x150xi32>
    %c32_i32 = arith.constant 32 : i32
    %41 = vector.broadcast %c32_i32 : i32 to vector<1x150xi32>
    %42 = arith.cmpi slt, %38, %41 : vector<1x150xi32>
    %43 = arith.andi %40, %42 : vector<1x150xi1>
    %cst_21 = arith.constant 0.000000e+00 : f32
    %44 = vector.shape_cast %43 : vector<1x150xi1> to vector<1x150xi1>
    %45 = vector.broadcast %44 : vector<1x150xi1> to vector<8x150xi1>
    %46 = vector.broadcast %cst_21 : f32 to vector<8x150xf32>
    %47 = arith.select %45, %34, %46 : vector<8x150xi1>, vector<8x150xf32>
    %c0_22 = arith.constant 0 : index
    %c0_23 = arith.constant 0 : index
    %c0_24 = arith.constant 0 : index
    %48 = vector.load %arg7[%c0_22, %c0_23, %c0_24] : memref<3x8x1xf32, #tpu.memory_space<vmem>>, vector<1x8x1xf32>
    %49 = vector.shape_cast %48 : vector<1x8x1xf32> to vector<8x1xf32>
    %c0_25 = arith.constant 0 : index
    %c0_26 = arith.constant 0 : index
    %c0_27 = arith.constant 0 : index
    %50 = vector.load %arg6[%c0_25, %c0_26, %c0_27] : memref<9x8x8xf32, #tpu.memory_space<vmem>>, vector<1x8x8xf32>
    %51 = vector.shape_cast %50 : vector<1x8x8xf32> to vector<8x8xf32>
    %c1_28 = arith.constant 1 : index
    %c0_29 = arith.constant 0 : index
    %c0_30 = arith.constant 0 : index
    %52 = vector.load %arg6[%c1_28, %c0_29, %c0_30] : memref<9x8x8xf32, #tpu.memory_space<vmem>>, vector<1x8x8xf32>
    %53 = vector.shape_cast %52 : vector<1x8x8xf32> to vector<8x8xf32>
    %c2_31 = arith.constant 2 : index
    %c0_32 = arith.constant 0 : index
    %c0_33 = arith.constant 0 : index
    %54 = vector.load %arg6[%c2_31, %c0_32, %c0_33] : memref<9x8x8xf32, #tpu.memory_space<vmem>>, vector<1x8x8xf32>
    %55 = vector.shape_cast %54 : vector<1x8x8xf32> to vector<8x8xf32>
    %56 = tpu.concatenate %51, %53, %55 in 1 : vector<8x8xf32>, vector<8x8xf32>, vector<8x8xf32> -> vector<8x24xf32>
    %57 = vector.extract_strided_slice %47 {offsets = [0, 0], sizes = [8, 148], strides = [1, 1]} : vector<8x150xf32> to vector<8x148xf32>
    %58 = vector.extract_strided_slice %47 {offsets = [0, 1], sizes = [8, 148], strides = [1, 1]} : vector<8x150xf32> to vector<8x148xf32>
    %59 = vector.extract_strided_slice %47 {offsets = [0, 2], sizes = [8, 148], strides = [1, 1]} : vector<8x150xf32> to vector<8x148xf32>
    %60 = tpu.concatenate %57, %58, %59 in 0 : vector<8x148xf32>, vector<8x148xf32>, vector<8x148xf32> -> vector<24x148xf32>
    %cst_34 = arith.constant dense<0.000000e+00> : vector<8x148xf32>
    %61 = tpu.matmul %56, %60, %cst_34 {dimension_numbers = #tpu.dot_dimension_numbers<[1], [0], [0], [1], [0, 0, 1, 1], [], []>} : vector<8x24xf32>, vector<24x148xf32>, vector<8x148xf32> -> vector<8x148xf32>
    %62 = vector.broadcast %49 : vector<8x1xf32> to vector<8x148xf32>
    %63 = arith.addf %61, %62 : vector<8x148xf32>
    %64 = vector.extract_strided_slice %6 {offsets = [0, 2], sizes = [8, 148], strides = [1, 1]} : vector<8x152xf32> to vector<8x148xf32>
    %65 = arith.addf %63, %64 : vector<8x148xf32>
    %c1_i32_35 = arith.constant 1 : i32
    %66 = arith.addi %8, %c1_i32_35 : i32
    %c1_i32_36 = arith.constant 1 : i32
    %67 = arith.addi %66, %c1_i32_36 : i32
    %68 = tpu.iota {dimensions = array<i32: 1>} : vector<1x148xi32>
    %69 = vector.broadcast %67 : i32 to vector<1x148xi32>
    %70 = arith.addi %69, %68 : vector<1x148xi32>
    %c0_i32_37 = arith.constant 0 : i32
    %71 = vector.broadcast %c0_i32_37 : i32 to vector<1x148xi32>
    %72 = arith.cmpi sge, %70, %71 : vector<1x148xi32>
    %c32_i32_38 = arith.constant 32 : i32
    %73 = vector.broadcast %c32_i32_38 : i32 to vector<1x148xi32>
    %74 = arith.cmpi slt, %70, %73 : vector<1x148xi32>
    %75 = arith.andi %72, %74 : vector<1x148xi1>
    %cst_39 = arith.constant 0.000000e+00 : f32
    %76 = vector.shape_cast %75 : vector<1x148xi1> to vector<1x148xi1>
    %77 = vector.broadcast %76 : vector<1x148xi1> to vector<8x148xi1>
    %78 = vector.broadcast %cst_39 : f32 to vector<8x148xf32>
    %79 = arith.select %77, %65, %78 : vector<8x148xi1>, vector<8x148xf32>
    %cst_40 = arith.constant 0.000000e+00 : f32
    %80 = vector.broadcast %cst_40 : f32 to vector<8x148xf32>
    %81 = arith.cmpf ogt, %79, %80 : vector<8x148xf32>
    %cst_41 = arith.constant 1.000000e-01 : f32
    %82 = vector.broadcast %cst_41 : f32 to vector<8x148xf32>
    %83 = arith.mulf %82, %79 : vector<8x148xf32>
    %84 = arith.select %81, %79, %83 : vector<8x148xi1>, vector<8x148xf32>
    %c1_42 = arith.constant 1 : index
    %c0_43 = arith.constant 0 : index
    %c0_44 = arith.constant 0 : index
    %85 = vector.load %arg5[%c1_42, %c0_43, %c0_44] : memref<3x8x1xf32, #tpu.memory_space<vmem>>, vector<1x8x1xf32>
    %86 = vector.shape_cast %85 : vector<1x8x1xf32> to vector<8x1xf32>
    %c3 = arith.constant 3 : index
    %c0_45 = arith.constant 0 : index
    %c0_46 = arith.constant 0 : index
    %87 = vector.load %arg4[%c3, %c0_45, %c0_46] : memref<9x8x8xf32, #tpu.memory_space<vmem>>, vector<1x8x8xf32>
    %88 = vector.shape_cast %87 : vector<1x8x8xf32> to vector<8x8xf32>
    %c4 = arith.constant 4 : index
    %c0_47 = arith.constant 0 : index
    %c0_48 = arith.constant 0 : index
    %89 = vector.load %arg4[%c4, %c0_47, %c0_48] : memref<9x8x8xf32, #tpu.memory_space<vmem>>, vector<1x8x8xf32>
    %90 = vector.shape_cast %89 : vector<1x8x8xf32> to vector<8x8xf32>
    %c5 = arith.constant 5 : index
    %c0_49 = arith.constant 0 : index
    %c0_50 = arith.constant 0 : index
    %91 = vector.load %arg4[%c5, %c0_49, %c0_50] : memref<9x8x8xf32, #tpu.memory_space<vmem>>, vector<1x8x8xf32>
    %92 = vector.shape_cast %91 : vector<1x8x8xf32> to vector<8x8xf32>
    %93 = tpu.concatenate %88, %90, %92 in 1 : vector<8x8xf32>, vector<8x8xf32>, vector<8x8xf32> -> vector<8x24xf32>
    %94 = vector.extract_strided_slice %84 {offsets = [0, 0], sizes = [8, 142], strides = [1, 1]} : vector<8x148xf32> to vector<8x142xf32>
    %95 = vector.extract_strided_slice %84 {offsets = [0, 3], sizes = [8, 142], strides = [1, 1]} : vector<8x148xf32> to vector<8x142xf32>
    %96 = vector.extract_strided_slice %84 {offsets = [0, 6], sizes = [8, 142], strides = [1, 1]} : vector<8x148xf32> to vector<8x142xf32>
    %97 = tpu.concatenate %94, %95, %96 in 0 : vector<8x142xf32>, vector<8x142xf32>, vector<8x142xf32> -> vector<24x142xf32>
    %cst_51 = arith.constant dense<0.000000e+00> : vector<8x142xf32>
    %98 = tpu.matmul %93, %97, %cst_51 {dimension_numbers = #tpu.dot_dimension_numbers<[1], [0], [0], [1], [0, 0, 1, 1], [], []>} : vector<8x24xf32>, vector<24x142xf32>, vector<8x142xf32> -> vector<8x142xf32>
    %99 = vector.broadcast %86 : vector<8x1xf32> to vector<8x142xf32>
    %100 = arith.addf %98, %99 : vector<8x142xf32>
    %cst_52 = arith.constant 0.000000e+00 : f32
    %101 = vector.broadcast %cst_52 : f32 to vector<8x142xf32>
    %102 = arith.cmpf ogt, %100, %101 : vector<8x142xf32>
    %cst_53 = arith.constant 1.000000e-01 : f32
    %103 = vector.broadcast %cst_53 : f32 to vector<8x142xf32>
    %104 = arith.mulf %103, %100 : vector<8x142xf32>
    %105 = arith.select %102, %100, %104 : vector<8x142xi1>, vector<8x142xf32>
    %c3_i32 = arith.constant 3 : i32
    %106 = arith.addi %67, %c3_i32 : i32
    %107 = tpu.iota {dimensions = array<i32: 1>} : vector<1x142xi32>
    %108 = vector.broadcast %106 : i32 to vector<1x142xi32>
    %109 = arith.addi %108, %107 : vector<1x142xi32>
    %c0_i32_54 = arith.constant 0 : i32
    %110 = vector.broadcast %c0_i32_54 : i32 to vector<1x142xi32>
    %111 = arith.cmpi sge, %109, %110 : vector<1x142xi32>
    %c32_i32_55 = arith.constant 32 : i32
    %112 = vector.broadcast %c32_i32_55 : i32 to vector<1x142xi32>
    %113 = arith.cmpi slt, %109, %112 : vector<1x142xi32>
    %114 = arith.andi %111, %113 : vector<1x142xi1>
    %cst_56 = arith.constant 0.000000e+00 : f32
    %115 = vector.shape_cast %114 : vector<1x142xi1> to vector<1x142xi1>
    %116 = vector.broadcast %115 : vector<1x142xi1> to vector<8x142xi1>
    %117 = vector.broadcast %cst_56 : f32 to vector<8x142xf32>
    %118 = arith.select %116, %105, %117 : vector<8x142xi1>, vector<8x142xf32>
    %c1_57 = arith.constant 1 : index
    %c0_58 = arith.constant 0 : index
    %c0_59 = arith.constant 0 : index
    %119 = vector.load %arg7[%c1_57, %c0_58, %c0_59] : memref<3x8x1xf32, #tpu.memory_space<vmem>>, vector<1x8x1xf32>
    %120 = vector.shape_cast %119 : vector<1x8x1xf32> to vector<8x1xf32>
    %c3_60 = arith.constant 3 : index
    %c0_61 = arith.constant 0 : index
    %c0_62 = arith.constant 0 : index
    %121 = vector.load %arg6[%c3_60, %c0_61, %c0_62] : memref<9x8x8xf32, #tpu.memory_space<vmem>>, vector<1x8x8xf32>
    %122 = vector.shape_cast %121 : vector<1x8x8xf32> to vector<8x8xf32>
    %c4_63 = arith.constant 4 : index
    %c0_64 = arith.constant 0 : index
    %c0_65 = arith.constant 0 : index
    %123 = vector.load %arg6[%c4_63, %c0_64, %c0_65] : memref<9x8x8xf32, #tpu.memory_space<vmem>>, vector<1x8x8xf32>
    %124 = vector.shape_cast %123 : vector<1x8x8xf32> to vector<8x8xf32>
    %c5_66 = arith.constant 5 : index
    %c0_67 = arith.constant 0 : index
    %c0_68 = arith.constant 0 : index
    %125 = vector.load %arg6[%c5_66, %c0_67, %c0_68] : memref<9x8x8xf32, #tpu.memory_space<vmem>>, vector<1x8x8xf32>
    %126 = vector.shape_cast %125 : vector<1x8x8xf32> to vector<8x8xf32>
    %127 = tpu.concatenate %122, %124, %126 in 1 : vector<8x8xf32>, vector<8x8xf32>, vector<8x8xf32> -> vector<8x24xf32>
    %128 = vector.extract_strided_slice %118 {offsets = [0, 0], sizes = [8, 140], strides = [1, 1]} : vector<8x142xf32> to vector<8x140xf32>
    %129 = vector.extract_strided_slice %118 {offsets = [0, 1], sizes = [8, 140], strides = [1, 1]} : vector<8x142xf32> to vector<8x140xf32>
    %130 = vector.extract_strided_slice %118 {offsets = [0, 2], sizes = [8, 140], strides = [1, 1]} : vector<8x142xf32> to vector<8x140xf32>
    %131 = tpu.concatenate %128, %129, %130 in 0 : vector<8x140xf32>, vector<8x140xf32>, vector<8x140xf32> -> vector<24x140xf32>
    %cst_69 = arith.constant dense<0.000000e+00> : vector<8x140xf32>
    %132 = tpu.matmul %127, %131, %cst_69 {dimension_numbers = #tpu.dot_dimension_numbers<[1], [0], [0], [1], [0, 0, 1, 1], [], []>} : vector<8x24xf32>, vector<24x140xf32>, vector<8x140xf32> -> vector<8x140xf32>
    %133 = vector.broadcast %120 : vector<8x1xf32> to vector<8x140xf32>
    %134 = arith.addf %132, %133 : vector<8x140xf32>
    %135 = vector.extract_strided_slice %79 {offsets = [0, 4], sizes = [8, 140], strides = [1, 1]} : vector<8x148xf32> to vector<8x140xf32>
    %136 = arith.addf %134, %135 : vector<8x140xf32>
    %c3_i32_70 = arith.constant 3 : i32
    %137 = arith.addi %67, %c3_i32_70 : i32
    %c1_i32_71 = arith.constant 1 : i32
    %138 = arith.addi %137, %c1_i32_71 : i32
    %139 = tpu.iota {dimensions = array<i32: 1>} : vector<1x140xi32>
    %140 = vector.broadcast %138 : i32 to vector<1x140xi32>
    %141 = arith.addi %140, %139 : vector<1x140xi32>
    %c0_i32_72 = arith.constant 0 : i32
    %142 = vector.broadcast %c0_i32_72 : i32 to vector<1x140xi32>
    %143 = arith.cmpi sge, %141, %142 : vector<1x140xi32>
    %c32_i32_73 = arith.constant 32 : i32
    %144 = vector.broadcast %c32_i32_73 : i32 to vector<1x140xi32>
    %145 = arith.cmpi slt, %141, %144 : vector<1x140xi32>
    %146 = arith.andi %143, %145 : vector<1x140xi1>
    %cst_74 = arith.constant 0.000000e+00 : f32
    %147 = vector.shape_cast %146 : vector<1x140xi1> to vector<1x140xi1>
    %148 = vector.broadcast %147 : vector<1x140xi1> to vector<8x140xi1>
    %149 = vector.broadcast %cst_74 : f32 to vector<8x140xf32>
    %150 = arith.select %148, %136, %149 : vector<8x140xi1>, vector<8x140xf32>
    %cst_75 = arith.constant 0.000000e+00 : f32
    %151 = vector.broadcast %cst_75 : f32 to vector<8x140xf32>
    %152 = arith.cmpf ogt, %150, %151 : vector<8x140xf32>
    %cst_76 = arith.constant 1.000000e-01 : f32
    %153 = vector.broadcast %cst_76 : f32 to vector<8x140xf32>
    %154 = arith.mulf %153, %150 : vector<8x140xf32>
    %155 = arith.select %152, %150, %154 : vector<8x140xi1>, vector<8x140xf32>
    %c2_77 = arith.constant 2 : index
    %c0_78 = arith.constant 0 : index
    %c0_79 = arith.constant 0 : index
    %156 = vector.load %arg5[%c2_77, %c0_78, %c0_79] : memref<3x8x1xf32, #tpu.memory_space<vmem>>, vector<1x8x1xf32>
    %157 = vector.shape_cast %156 : vector<1x8x1xf32> to vector<8x1xf32>
    %c6 = arith.constant 6 : index
    %c0_80 = arith.constant 0 : index
    %c0_81 = arith.constant 0 : index
    %158 = vector.load %arg4[%c6, %c0_80, %c0_81] : memref<9x8x8xf32, #tpu.memory_space<vmem>>, vector<1x8x8xf32>
    %159 = vector.shape_cast %158 : vector<1x8x8xf32> to vector<8x8xf32>
    %c7 = arith.constant 7 : index
    %c0_82 = arith.constant 0 : index
    %c0_83 = arith.constant 0 : index
    %160 = vector.load %arg4[%c7, %c0_82, %c0_83] : memref<9x8x8xf32, #tpu.memory_space<vmem>>, vector<1x8x8xf32>
    %161 = vector.shape_cast %160 : vector<1x8x8xf32> to vector<8x8xf32>
    %c8 = arith.constant 8 : index
    %c0_84 = arith.constant 0 : index
    %c0_85 = arith.constant 0 : index
    %162 = vector.load %arg4[%c8, %c0_84, %c0_85] : memref<9x8x8xf32, #tpu.memory_space<vmem>>, vector<1x8x8xf32>
    %163 = vector.shape_cast %162 : vector<1x8x8xf32> to vector<8x8xf32>
    %164 = tpu.concatenate %159, %161, %163 in 1 : vector<8x8xf32>, vector<8x8xf32>, vector<8x8xf32> -> vector<8x24xf32>
    %165 = vector.extract_strided_slice %155 {offsets = [0, 0], sizes = [8, 130], strides = [1, 1]} : vector<8x140xf32> to vector<8x130xf32>
    %166 = vector.extract_strided_slice %155 {offsets = [0, 5], sizes = [8, 130], strides = [1, 1]} : vector<8x140xf32> to vector<8x130xf32>
    %167 = vector.extract_strided_slice %155 {offsets = [0, 10], sizes = [8, 130], strides = [1, 1]} : vector<8x140xf32> to vector<8x130xf32>
    %168 = tpu.concatenate %165, %166, %167 in 0 : vector<8x130xf32>, vector<8x130xf32>, vector<8x130xf32> -> vector<24x130xf32>
    %cst_86 = arith.constant dense<0.000000e+00> : vector<8x130xf32>
    %169 = tpu.matmul %164, %168, %cst_86 {dimension_numbers = #tpu.dot_dimension_numbers<[1], [0], [0], [1], [0, 0, 1, 1], [], []>} : vector<8x24xf32>, vector<24x130xf32>, vector<8x130xf32> -> vector<8x130xf32>
    %170 = vector.broadcast %157 : vector<8x1xf32> to vector<8x130xf32>
    %171 = arith.addf %169, %170 : vector<8x130xf32>
    %cst_87 = arith.constant 0.000000e+00 : f32
    %172 = vector.broadcast %cst_87 : f32 to vector<8x130xf32>
    %173 = arith.cmpf ogt, %171, %172 : vector<8x130xf32>
    %cst_88 = arith.constant 1.000000e-01 : f32
    %174 = vector.broadcast %cst_88 : f32 to vector<8x130xf32>
    %175 = arith.mulf %174, %171 : vector<8x130xf32>
    %176 = arith.select %173, %171, %175 : vector<8x130xi1>, vector<8x130xf32>
    %c5_i32 = arith.constant 5 : i32
    %177 = arith.addi %138, %c5_i32 : i32
    %178 = tpu.iota {dimensions = array<i32: 1>} : vector<1x130xi32>
    %179 = vector.broadcast %177 : i32 to vector<1x130xi32>
    %180 = arith.addi %179, %178 : vector<1x130xi32>
    %c0_i32_89 = arith.constant 0 : i32
    %181 = vector.broadcast %c0_i32_89 : i32 to vector<1x130xi32>
    %182 = arith.cmpi sge, %180, %181 : vector<1x130xi32>
    %c32_i32_90 = arith.constant 32 : i32
    %183 = vector.broadcast %c32_i32_90 : i32 to vector<1x130xi32>
    %184 = arith.cmpi slt, %180, %183 : vector<1x130xi32>
    %185 = arith.andi %182, %184 : vector<1x130xi1>
    %cst_91 = arith.constant 0.000000e+00 : f32
    %186 = vector.shape_cast %185 : vector<1x130xi1> to vector<1x130xi1>
    %187 = vector.broadcast %186 : vector<1x130xi1> to vector<8x130xi1>
    %188 = vector.broadcast %cst_91 : f32 to vector<8x130xf32>
    %189 = arith.select %187, %176, %188 : vector<8x130xi1>, vector<8x130xf32>
    %c2_92 = arith.constant 2 : index
    %c0_93 = arith.constant 0 : index
    %c0_94 = arith.constant 0 : index
    %190 = vector.load %arg7[%c2_92, %c0_93, %c0_94] : memref<3x8x1xf32, #tpu.memory_space<vmem>>, vector<1x8x1xf32>
    %191 = vector.shape_cast %190 : vector<1x8x1xf32> to vector<8x1xf32>
    %c6_95 = arith.constant 6 : index
    %c0_96 = arith.constant 0 : index
    %c0_97 = arith.constant 0 : index
    %192 = vector.load %arg6[%c6_95, %c0_96, %c0_97] : memref<9x8x8xf32, #tpu.memory_space<vmem>>, vector<1x8x8xf32>
    %193 = vector.shape_cast %192 : vector<1x8x8xf32> to vector<8x8xf32>
    %c7_98 = arith.constant 7 : index
    %c0_99 = arith.constant 0 : index
    %c0_100 = arith.constant 0 : index
    %194 = vector.load %arg6[%c7_98, %c0_99, %c0_100] : memref<9x8x8xf32, #tpu.memory_space<vmem>>, vector<1x8x8xf32>
    %195 = vector.shape_cast %194 : vector<1x8x8xf32> to vector<8x8xf32>
    %c8_101 = arith.constant 8 : index
    %c0_102 = arith.constant 0 : index
    %c0_103 = arith.constant 0 : index
    %196 = vector.load %arg6[%c8_101, %c0_102, %c0_103] : memref<9x8x8xf32, #tpu.memory_space<vmem>>, vector<1x8x8xf32>
    %197 = vector.shape_cast %196 : vector<1x8x8xf32> to vector<8x8xf32>
    %198 = tpu.concatenate %193, %195, %197 in 1 : vector<8x8xf32>, vector<8x8xf32>, vector<8x8xf32> -> vector<8x24xf32>
    %199 = vector.extract_strided_slice %189 {offsets = [0, 0], sizes = [8, 128], strides = [1, 1]} : vector<8x130xf32> to vector<8x128xf32>
    %200 = vector.extract_strided_slice %189 {offsets = [0, 1], sizes = [8, 128], strides = [1, 1]} : vector<8x130xf32> to vector<8x128xf32>
    %201 = vector.extract_strided_slice %189 {offsets = [0, 2], sizes = [8, 128], strides = [1, 1]} : vector<8x130xf32> to vector<8x128xf32>
    %202 = tpu.concatenate %199, %200, %201 in 0 : vector<8x128xf32>, vector<8x128xf32>, vector<8x128xf32> -> vector<24x128xf32>
    %cst_104 = arith.constant dense<0.000000e+00> : vector<8x128xf32>
    %203 = tpu.matmul %198, %202, %cst_104 {dimension_numbers = #tpu.dot_dimension_numbers<[1], [0], [0], [1], [0, 0, 1, 1], [], []>} : vector<8x24xf32>, vector<24x128xf32>, vector<8x128xf32> -> vector<8x128xf32>
    %204 = vector.broadcast %191 : vector<8x1xf32> to vector<8x128xf32>
    %205 = arith.addf %203, %204 : vector<8x128xf32>
    %206 = vector.extract_strided_slice %150 {offsets = [0, 6], sizes = [8, 128], strides = [1, 1]} : vector<8x140xf32> to vector<8x128xf32>
    %207 = arith.addf %205, %206 : vector<8x128xf32>
    %c0_105 = arith.constant 0 : index
    %c0_106 = arith.constant 0 : index
    %c0_107 = arith.constant 0 : index
    %208 = vector.load %arg8[%c0_105, %c0_106, %c0_107] : memref<1x8x128xf32, #tpu.memory_space<vmem>>, vector<1x8x128xf32>
    %209 = vector.shape_cast %208 : vector<1x8x128xf32> to vector<8x128xf32>
    %210 = vector.shape_cast %207 : vector<8x128xf32> to vector<1x8x128xf32>
    tpu.vector_store %arg8[%c0_105, %c0_106, %c0_107], %210 {strides = array<i32>} : memref<1x8x128xf32, #tpu.memory_space<vmem>>, vector<1x8x128xf32>,
    return
  }
  func.func @transform_0(%arg0: i32, %arg1: i32) -> (i32, i32, i32) {
    %c0_i32 = arith.constant 0 : i32
    %c0_i32_0 = arith.constant 0 : i32
    return %arg0, %c0_i32, %arg1 : i32, i32, i32
  }
  func.func @transform_1(%arg0: i32, %arg1: i32) -> (i32, i32, i32) {
    %c1_i32 = arith.constant 1 : i32
    %0 = arith.muli %arg0, %c1_i32 : i32
    %1 = arith.addi %0, %arg1 : i32
    %c0_i32 = arith.constant 0 : i32
    %c0_i32_0 = arith.constant 0 : i32
    %c0_i32_1 = arith.constant 0 : i32
    return %1, %c0_i32, %c0_i32_0 : i32, i32, i32
  }
  func.func @transform_2(%arg0: i32, %arg1: i32) -> (i32, i32, i32) {
    %c0_i32 = arith.constant 0 : i32
    %c0_i32_0 = arith.constant 0 : i32
    %c0_i32_1 = arith.constant 0 : i32
    %c0_i32_2 = arith.constant 0 : i32
    return %c0_i32, %c0_i32_0, %c0_i32_1 : i32, i32, i32
  }
  func.func @transform_3(%arg0: i32, %arg1: i32) -> (i32, i32, i32) {
    %c0_i32 = arith.constant 0 : i32
    %c0_i32_0 = arith.constant 0 : i32
    %c0_i32_1 = arith.constant 0 : i32
    %c0_i32_2 = arith.constant 0 : i32
    return %c0_i32, %c0_i32_0, %c0_i32_1 : i32, i32, i32
  }
  func.func @transform_4(%arg0: i32, %arg1: i32) -> (i32, i32, i32) {
    %c0_i32 = arith.constant 0 : i32
    %c0_i32_0 = arith.constant 0 : i32
    %c0_i32_1 = arith.constant 0 : i32
    %c0_i32_2 = arith.constant 0 : i32
    return %c0_i32, %c0_i32_0, %c0_i32_1 : i32, i32, i32
  }
  func.func @transform_5(%arg0: i32, %arg1: i32) -> (i32, i32, i32) {
    %c0_i32 = arith.constant 0 : i32
    %c0_i32_0 = arith.constant 0 : i32
    %c0_i32_1 = arith.constant 0 : i32
    %c0_i32_2 = arith.constant 0 : i32
    return %c0_i32, %c0_i32_0, %c0_i32_1 : i32, i32, i32
  }
  func.func @transform_6(%arg0: i32, %arg1: i32) -> (i32, i32, i32) {
    %c0_i32 = arith.constant 0 : i32
    %c0_i32_0 = arith.constant 0 : i32
    return %arg0, %c0_i32, %arg1 : i32, i32, i32
  }
}

</mosaic_0001>

<llo_original>
// kernel: tpu_custom_call.1
$region0: #{tpu_custom_call.1}
  #allocation0 [shape = 'u32[]', space=smem, size = 0x4, offset = 0x4, fixed_abs, tag = 'smem constant byte address 0x4 - core index']
  #allocation1 [shape = 'u32[72,128]{1,0:T(1,128)}', space=vmem, size = 0x9000, scoped, tag = 'internal scratch']
  %s0 = inlined_call_operand.vmem [shape: f32[2,8,128], index: 0, kind: input, shape index: {}]
  %s1 = inlined_call_operand.vmem [shape: f32[2,8,24], index: 1, kind: input, shape index: {}]
  %s2 = inlined_call_operand.vmem [shape: f32[9,8,8], index: 2, kind: input, shape index: {}]
  %s3 = inlined_call_operand.vmem [shape: f32[3,8,1], index: 3, kind: input, shape index: {}]
  %s4 = inlined_call_operand.vmem [shape: f32[9,8,8], index: 4, kind: input, shape index: {}]
  %s5 = inlined_call_operand.vmem [shape: f32[3,8,1], index: 5, kind: input, shape index: {}]
  %s6 = inlined_call_operand.hbm [shape: f32[2,8,128], index: 6, kind: output, shape index: {}]
  %s7 = sld [smem:[#allocation0]]
  $region57: #{tpu_custom_call.1} parent=0
    _
  %s9 = ssub.s32 1, %s7
  %s10 = scalar_select 0, %s9, %s7
  $region1: #{tpu_custom_call.1} parent=0
    #allocation2 [shape = 'u8[8192]{0}', space=vmem, size = 0x2000, scoped, tag = 'output window, operand 0']
    #allocation3 [shape = 's32[2]{0}', space=sflag, size = 0x8, scoped, tag = 'scoped memory for tpu_custom_call.1']
    %11 = vsyncpa [#allocation3], 0
    %s12 = scalar_lea.sflag [#allocation3], 1
    %13 = vsyncpa %s12, 0
    loop: start=0, step=1, limit=4
    $region2: #{tpu_custom_call.1} parent=1 // loop_pre_header
      _
    $region3: #{tpu_custom_call.1} parent=1 // loop_header
      %s15 = sphi 0, %s19
      %p16 = scmp.ge.s32.totalorder %s15, 4
      %s22 = sphi 0, %s34
      %s23 = sphi 0, %s30
      %s24 = sphi 0, %s22
      %s25 = sphi 0, %s23
      %s26 = sphi 0, %s24
      %s27 = sphi 0, %s25
      %s39 = sphi 0, %s41
      %s42 = sphi 0, %s39
      %s43 = sphi 0, %s42
      %s59 = sphi 0, %s43
      %s67 = sphi 0, %s69
      %s70 = sphi 0, %s67
      %s71 = sphi 0, %s70
      %s87 = sphi 0, %s71
      %s91 = sphi 0, %s91
      %s93 = sphi 0, %s91
      %s94 = sphi 0, %s93
      %s108 = sphi 0, %s94
      %s112 = sphi 0, %s112
      %s114 = sphi 0, %s112
      %s115 = sphi 0, %s114
      %s129 = sphi 0, %s115
      %s133 = sphi 0, %s133
      %s135 = sphi 0, %s133
      %s136 = sphi 0, %s135
      %s150 = sphi 0, %s136
      %s154 = sphi 0, %s154
      %s156 = sphi 0, %s154
      %s157 = sphi 0, %s156
      %s171 = sphi 0, %s157
      %s179 = sphi 0, %s181
      %s182 = sphi 0, %s179
      %s183 = sphi 0, %s182
      %s199 = sphi 0, %s183
    $region4: #{tpu_custom_call.1} parent=1 // loop_header_branch
      %18 = sbr.rel (%p16) target = $region8
    $region5: #{tpu_custom_call.1} parent=1 // loop_body
      %s20 = ssub.s32 %s15, 1
      %s21 = ssub.s32 %s15, 2
      %s28 = sadd.s32 1, %s23
      %p29 = scmp.ge.s32.totalorder %s28, 1
      %s30 = scalar_select %p29, 0, %s28
      %s31 = sadd.s32 1, %s22
      %s32 = scalar_select %p29, %s31, %s22
      %p33 = scmp.ge.s32.totalorder %s32, 2
      %s34 = scalar_select %p33, 0, %s32
      %s35 = ssub.s32 %s22, %s34
      %s36 = ssub.s32 %s23, %s30
      %s37 = sor.u32 %s35, %s36
      %p38 = scmp.eq.s32.totalorder %s37, 0
      %s40 = sadd.s32 %s39, 1
      %s41 = scalar_select %p38, %s39, %s40
      %p44 = pneg %p38
      %p45 = scmp.eq.s32.totalorder %s15, 1
      %p46 = por %p44, %p45
      %p47 = scmp.ne.s32.totalorder %s39, %s42
      %p48 = scmp.eq.s32.totalorder %s15, 0
      %p49 = por %p47, %p48
      %p50 = scmp.ne.s32.totalorder %s39, %s42
      %p51 = scmp.eq.s32.totalorder %s20, 1
      %p52 = por %p50, %p51
      %p53 = scmp.ne.s32.totalorder %s42, %s43
      %p54 = scmp.eq.s32.totalorder %s20, 0
      %p55 = por %p53, %p54
      %p56 = scmp.ne.s32.totalorder %s42, %s43
      %p57 = scmp.eq.s32.totalorder %s21, 1
      %p58 = por %p56, %p57
      %p60 = scmp.ne.s32.totalorder %s43, %s59
      %p61 = scmp.eq.s32.totalorder %s21, 0
      %p62 = por %p60, %p61
      %s63 = sadd.s32 %s22, %s23
      %s64 = sadd.s32 %s34, %s30
      %s65 = ssub.s32 %s63, %s64
      %p66 = scmp.eq.s32.totalorder %s65, 0
      %s68 = sadd.s32 %s67, 1
      %s69 = scalar_select %p66, %s67, %s68
      %p72 = pneg %p66
      %p73 = scmp.eq.s32.totalorder %s15, 1
      %p74 = por %p72, %p73
      %p75 = scmp.ne.s32.totalorder %s67, %s70
      %p76 = scmp.eq.s32.totalorder %s15, 0
      %p77 = por %p75, %p76
      %p78 = scmp.ne.s32.totalorder %s67, %s70
      %p79 = scmp.eq.s32.totalorder %s20, 1
      %p80 = por %p78, %p79
      %p81 = scmp.ne.s32.totalorder %s70, %s71
      %p82 = scmp.eq.s32.totalorder %s20, 0
      %p83 = por %p81, %p82
      %p84 = scmp.ne.s32.totalorder %s70, %s71
      %p85 = scmp.eq.s32.totalorder %s21, 1
      %p86 = por %p84, %p85
      %p88 = scmp.ne.s32.totalorder %s71, %s87
      %p89 = scmp.eq.s32.totalorder %s21, 0
      %p90 = por %p88, %p89
      %s92 = sadd.s32 %s91, 1
      %p95 = scmp.eq.s32.totalorder %s15, 1
      %p96 = scmp.ne.s32.totalorder %s91, %s93
      %p97 = scmp.eq.s32.totalorder %s15, 0
      %p98 = por %p96, %p97
      %p99 = scmp.ne.s32.totalorder %s91, %s93
      %p100 = scmp.eq.s32.totalorder %s20, 1
      %p101 = por %p99, %p100
      %p102 = scmp.ne.s32.totalorder %s93, %s94
      %p103 = scmp.eq.s32.totalorder %s20, 0
      %p104 = por %p102, %p103
      %p105 = scmp.ne.s32.totalorder %s93, %s94
      %p106 = scmp.eq.s32.totalorder %s21, 1
      %p107 = por %p105, %p106
      %p109 = scmp.ne.s32.totalorder %s94, %s108
      %p110 = scmp.eq.s32.totalorder %s21, 0
      %p111 = por %p109, %p110
      %s113 = sadd.s32 %s112, 1
      %p116 = scmp.eq.s32.totalorder %s15, 1
      %p117 = scmp.ne.s32.totalorder %s112, %s114
      %p118 = scmp.eq.s32.totalorder %s15, 0
      %p119 = por %p117, %p118
      %p120 = scmp.ne.s32.totalorder %s112, %s114
      %p121 = scmp.eq.s32.totalorder %s20, 1
      %p122 = por %p120, %p121
      %p123 = scmp.ne.s32.totalorder %s114, %s115
      %p124 = scmp.eq.s32.totalorder %s20, 0
      %p125 = por %p123, %p124
      %p126 = scmp.ne.s32.totalorder %s114, %s115
      %p127 = scmp.eq.s32.totalorder %s21, 1
      %p128 = por %p126, %p127
      %p130 = scmp.ne.s32.totalorder %s115, %s129
      %p131 = scmp.eq.s32.totalorder %s21, 0
      %p132 = por %p130, %p131
      %s134 = sadd.s32 %s133, 1
      %p137 = scmp.eq.s32.totalorder %s15, 1
      %p138 = scmp.ne.s32.totalorder %s133, %s135
      %p139 = scmp.eq.s32.totalorder %s15, 0
      %p140 = por %p138, %p139
      %p141 = scmp.ne.s32.totalorder %s133, %s135
      %p142 = scmp.eq.s32.totalorder %s20, 1
      %p143 = por %p141, %p142
      %p144 = scmp.ne.s32.totalorder %s135, %s136
      %p145 = scmp.eq.s32.totalorder %s20, 0
      %p146 = por %p144, %p145
      %p147 = scmp.ne.s32.totalorder %s135, %s136
      %p148 = scmp.eq.s32.totalorder %s21, 1
      %p149 = por %p147, %p148
      %p151 = scmp.ne.s32.totalorder %s136, %s150
      %p152 = scmp.eq.s32.totalorder %s21, 0
      %p153 = por %p151, %p152
      %s155 = sadd.s32 %s154, 1
      %p158 = scmp.eq.s32.totalorder %s15, 1
      %p159 = scmp.ne.s32.totalorder %s154, %s156
      %p160 = scmp.eq.s32.totalorder %s15, 0
      %p161 = por %p159, %p160
      %p162 = scmp.ne.s32.totalorder %s154, %s156
      %p163 = scmp.eq.s32.totalorder %s20, 1
      %p164 = por %p162, %p163
      %p165 = scmp.ne.s32.totalorder %s156, %s157
      %p166 = scmp.eq.s32.totalorder %s20, 0
      %p167 = por %p165, %p166
      %p168 = scmp.ne.s32.totalorder %s156, %s157
      %p169 = scmp.eq.s32.totalorder %s21, 1
      %p170 = por %p168, %p169
      %p172 = scmp.ne.s32.totalorder %s157, %s171
      %p173 = scmp.eq.s32.totalorder %s21, 0
      %p174 = por %p172, %p173
      %s175 = ssub.s32 %s22, %s34
      %s176 = ssub.s32 %s23, %s30
      %s177 = sor.u32 %s175, %s176
      %p178 = scmp.eq.s32.totalorder %s177, 0
      %s180 = sadd.s32 %s179, 1
      %s181 = scalar_select %p178, %s179, %s180
      %p184 = pneg %p178
      %p185 = scmp.eq.s32.totalorder %s15, 1
      %p186 = por %p184, %p185
      %p187 = scmp.ne.s32.totalorder %s179, %s182
      %p188 = scmp.eq.s32.totalorder %s15, 0
      %p189 = por %p187, %p188
      %p190 = scmp.ne.s32.totalorder %s179, %s182
      %p191 = scmp.eq.s32.totalorder %s20, 1
      %p192 = por %p190, %p191
      %p193 = scmp.ne.s32.totalorder %s182, %s183
      %p194 = scmp.eq.s32.totalorder %s20, 0
      %p195 = por %p193, %p194
      %p196 = scmp.ne.s32.totalorder %s182, %s183
      %p197 = scmp.eq.s32.totalorder %s21, 1
      %p198 = por %p196, %p197
      %p200 = scmp.ne.s32.totalorder %s183, %s199
      %p201 = scmp.eq.s32.totalorder %s21, 0
      %p202 = por %p200, %p201
      %p203 = scmp.le.s32.totalorder 1, %s15
      %p204 = scmp.lt.s32.totalorder %s15, 3
      %p205 = pnand %p203, %p204
      %p206 = pneg %p205
      // Predicated region
      $region9: #{tpu_custom_call.1} parent=5 // pred_check
        _
      $region10: #{tpu_custom_call.1} parent=5 // pred_check_branch
        %208 = sbr.rel (%p205) target = $region12
      $region11: #{tpu_custom_call.1} parent=5 // pred_region
        %s209 = ssub.s32 %s15, 1
        // Predicated region
        $region13: #{tpu_custom_call.1} parent=11 // pred_check
          %p210 = pneg %p104
        $region14: #{tpu_custom_call.1} parent=11 // pred_check_branch
          %212 = sbr.rel (%p210) target = $region16
        $region15: #{tpu_custom_call.1} parent=11 // pred_region
          _
        $region16: #{tpu_custom_call.1} parent=11 // pred_fallthru
          _
        // Predicated region
        $region17: #{tpu_custom_call.1} parent=11 // pred_check
          %p213 = pneg %p125
        $region18: #{tpu_custom_call.1} parent=11 // pred_check_branch
          %215 = sbr.rel (%p213) target = $region20
        $region19: #{tpu_custom_call.1} parent=11 // pred_region
          _
        $region20: #{tpu_custom_call.1} parent=11 // pred_fallthru
          _
        // Predicated region
        $region21: #{tpu_custom_call.1} parent=11 // pred_check
          %p216 = pneg %p146
        $region22: #{tpu_custom_call.1} parent=11 // pred_check_branch
          %218 = sbr.rel (%p216) target = $region24
        $region23: #{tpu_custom_call.1} parent=11 // pred_region
          _
        $region24: #{tpu_custom_call.1} parent=11 // pred_fallthru
          _
        // Predicated region
        $region25: #{tpu_custom_call.1} parent=11 // pred_check
          %p219 = pneg %p167
        $region26: #{tpu_custom_call.1} parent=11 // pred_check_branch
          %221 = sbr.rel (%p219) target = $region28
        $region27: #{tpu_custom_call.1} parent=11 // pred_region
          _
        $region28: #{tpu_custom_call.1} parent=11 // pred_fallthru
          _
      $region12: #{tpu_custom_call.1} parent=5 // pred_fallthru
        _
      %p222 = scmp.lt.s32.totalorder %s15, 2
      // Predicated region
      $region29: #{tpu_custom_call.1} parent=5 // pred_check
        %p223 = pneg %p222
      $region30: #{tpu_custom_call.1} parent=5 // pred_check_branch
        %225 = sbr.rel (%p223) target = $region32
      $region31: #{tpu_custom_call.1} parent=5 // pred_region
        // Predicated region
        $region33: #{tpu_custom_call.1} parent=31 // pred_check
          %p226 = pneg %p49
        $region34: #{tpu_custom_call.1} parent=31 // pred_check_branch
          %228 = sbr.rel (%p226) target = $region36
        $region35: #{tpu_custom_call.1} parent=31 // pred_region
          %p229 = scmp.lt.s32.totalorder %s22, 1
          %s230 = scalar_select %p229, %s22, 1
          %p231 = scmp.lt.s32.totalorder %s23, 0
          %s232 = scalar_select %p231, %s23, 0
          %s233 = sadd.s32 %s232, %s230
          %s234 = smul.addr %s233, 8
          %s235 = scalar_lea.vmem %s0, %s234
        $region36: #{tpu_custom_call.1} parent=31 // pred_fallthru
          _
        // Predicated region
        $region37: #{tpu_custom_call.1} parent=31 // pred_check
          %p236 = pneg %p77
        $region38: #{tpu_custom_call.1} parent=31 // pred_check_branch
          %238 = sbr.rel (%p236) target = $region40
        $region39: #{tpu_custom_call.1} parent=31 // pred_region
          %s239 = sadd.s32 %s22, %s23
          %p240 = scmp.lt.s32.totalorder %s239, 1
          %s241 = scalar_select %p240, %s239, 1
          %s242 = smul.addr %s241, 8
          %s243 = scalar_lea.vmem %s1, %s242
          %s244 = sadd.s32 %s22, %s23
        $region40: #{tpu_custom_call.1} parent=31 // pred_fallthru
          _
      $region32: #{tpu_custom_call.1} parent=5 // pred_fallthru
        _
      %p245 = scmp.le.s32.totalorder 1, %s15
      %p246 = scmp.lt.s32.totalorder %s15, 3
      %p247 = pnand %p245, %p246
      %p248 = pneg %p247
      // Predicated region
      $region41: #{tpu_custom_call.1} parent=5 // pred_check
        _
      $region42: #{tpu_custom_call.1} parent=5 // pred_check_branch
        %250 = sbr.rel (%p247) target = $region44
      $region43: #{tpu_custom_call.1} parent=5 // pred_region
        %s251 = ssub.s32 %s15, 1
        %p252 = scmp.lt.s32.totalorder %s24, 1
        %s253 = scalar_select %p252, %s24, 1
        %p254 = scmp.lt.s32.totalorder %s25, 0
        %s255 = scalar_select %p254, %s25, 0
        %s256 = sadd.s32 %s255, %s253
        %s257 = smul.addr %s256, 8
        %s258 = scalar_lea.vmem %s0, %s257
        %p259 = pneg %p55
        %p260 = pneg %p52
        %s261 = sadd.s32 %s24, %s25
        %p262 = scmp.lt.s32.totalorder %s261, 1
        %s263 = scalar_select %p262, %s261, 1
        %s264 = smul.addr %s263, 8
        %s265 = scalar_lea.vmem %s1, %s264
        %p266 = pneg %p83
        %p267 = pneg %p80
        %p268 = pneg %p104
        %p269 = pneg %p101
        %p270 = pneg %p125
        %p271 = pneg %p122
        %p272 = pneg %p146
        %p273 = pneg %p143
        %p274 = pneg %p167
        %p275 = pneg %p164
        %p276 = pneg %p195
        %p277 = pneg %p192
        %s278 = sand.u32 %s182, 1
        %s279 = scalar_lea.sflag [#allocation3], %s278
        %s280 = sand.u32 %s182, 1
        %s281 = smul.addr %s280, 8
        %s282 = scalar_lea.vmem [#allocation2], %s281
        %p283 = scmp.lt.s32.totalorder %s24, 1
        %s284 = scalar_select %p283, %s24, 1
        %p285 = scmp.lt.s32.totalorder %s25, 0
        %s286 = scalar_select %p285, %s25, 0
        %s287 = sadd.s32 %s286, %s284
        %s288 = smul.addr %s287, 8
        %s289 = scalar_lea.vmem %s0, %s288
        %s290 = sadd.s32 %s24, %s25
        %p291 = scmp.lt.s32.totalorder %s290, 1
        %s292 = scalar_select %p291, %s290, 1
        %s293 = smul.addr %s292, 8
        %s294 = scalar_lea.vmem %s1, %s293
        %s295 = sadd.s32 %s24, %s25
        %v296 = vld [vmem:[%s294] sm:$0xff]
        %v297 = vld [vmem:[%s289] sm:$0xff]
        %299 = vrot.lane.b32.xlu0 %v297, 12
        %v300 = vpop.permute.xlu0 %299
        %vm302 = vcmask 97280
        %v303 = vsel %vm302, %v296, %v300
        %v304 = vsel %vm302, %v300, %v296
        %s305 = smul.u32 %s25, 128
        %vm306 = vcmp.gt.f32.partialorder %v303, 0.0
        %vm307 = vcmp.gt.f32.partialorder %v304, 0.0
        %v308 = vmul.f32 %v303, 0.1
        %v309 = vmul.f32 %v304, 0.1
        %v310 = vsel %vm306, %v303, %v308
        %v311 = vsel %vm307, %v304, %v309
        %v312 = vld [vmem:[%s3] sm:$0xff]
        %v313 = vld [vmem:[%s2] sm:$0xff]
        %s314 = scalar_lea.vmem %s2, 8
        %v315 = vld [vmem:[%s314] sm:$0xff]
        %s316 = scalar_lea.vmem %s2, 16
        %v317 = vld [vmem:[%s316] sm:$0xff]
        %319 = vrot.lane.b32.xlu0 %v315, 8
        %v320 = vpop.permute.xlu0 %319
        %323 = vrot.lane.b32.xlu0 %v317, 16
        %v324 = vpop.permute.xlu0 %323
        %vm326 = vcmask 64512
        %v327 = vsel %vm326, %v313, %v320
        %vm328 = vcmask 130048
        %v329 = vsel %vm328, %v327, %v324
        %332 = vrot.lane.b32.xlu0 %v310, 127
        %v333 = vpop.permute.xlu0 %332
        %334 = vrot.lane.b32.xlu0 %v311, 127
        %v335 = vpop.permute.xlu0 %334
        %vm336 = vcmask 1039360
        %v337 = vsel %vm336, %v333, %v335
        %340 = vrot.lane.b32.xlu0 %v310, 126
        %v341 = vpop.permute.xlu0 %340
        %342 = vrot.lane.b32.xlu0 %v311, 126
        %v343 = vpop.permute.xlu0 %342
        %vm344 = vcmask 1031168
        %v345 = vsel %vm344, %v341, %v343
        %349 = vset.pattern.permute.xlu0 0
        %350 = vperm.xlu0 %349, %v312
        %v351 = vpop.permute.xlu0 %350
        %vm353 = vcmask 195584
        %v355 = vsel %vm353, %v329, 0
        %357 = vmatpush.msra.mxu0 0.0
        %358 = vmatpush.msra.mxu0 0.0
        %359 = vmatpush.msra.mxu0 0.0
        %360 = vmatpush.msra.mxu0 0.0
        %361 = vmatpush.msra.mxu0 0.0
        %362 = vmatpush.msra.mxu0 0.0
        %363 = vmatpush.msra.mxu0 0.0
        %364 = vmatpush.msra.mxu0 0.0
        %365 = vmatpush.msra.mxu0 0.0
        %366 = vmatpush.msra.mxu0 0.0
        %367 = vmatpush.msra.mxu0 0.0
        %368 = vmatpush.msra.mxu0 0.0
        %369 = vmatpush.msra.mxu0 0.0
        %370 = vmatpush.msra.mxu0 %v345
        %371 = vmatpush.msra.mxu0 %v337
        %372 = vmatpush.msra.mxu0 %v310
        %373 = vmatmul.f32.gmra.mxu0 %v355
        %v374 = vpop.f32.mrf.mxu0
        %v375 = vadd.f32 %v351, %v374
        %376 = vdwg.mxu0
        %377 = vmatpush.msra.mxu0 0.0
        %378 = vmatpush.msra.mxu0 0.0
        %379 = vmatpush.msra.mxu0 0.0
        %380 = vmatpush.msra.mxu0 0.0
        %381 = vmatpush.msra.mxu0 0.0
        %382 = vmatpush.msra.mxu0 0.0
        %383 = vmatpush.msra.mxu0 0.0
        %384 = vmatpush.msra.mxu0 0.0
        %385 = vmatpush.msra.mxu0 0.0
        %386 = vmatpush.msra.mxu0 0.0
        %387 = vmatpush.msra.mxu0 0.0
        %388 = vmatpush.msra.mxu0 0.0
        %389 = vmatpush.msra.mxu0 0.0
        %390 = vmatpush.msra.mxu0 %v343
        %391 = vmatpush.msra.mxu0 %v335
        %392 = vmatpush.msra.mxu0 %v311
        %393 = vmatmul.f32.gmra.mxu0 %v355
        %v394 = vpop.f32.mrf.mxu0
        %v395 = vadd.f32 %v351, %v394
        %396 = vdwg.mxu0
        %vm397 = vcmp.gt.f32.partialorder %v375, 0.0
        %vm398 = vcmp.gt.f32.partialorder %v395, 0.0
        %v399 = vmul.f32 %v375, 0.1
        %v400 = vmul.f32 %v395, 0.1
        %v401 = vsel %vm397, %v375, %v399
        %v402 = vsel %vm398, %v395, %v400
        %s403 = sadd.s32 %s305, 4294967285
        %v404 = vlaneseq
        %v405 = vand.u32 %v404, 127
        %v406 = vadd.s32 %v405, 128
        %v407 = vstv %s403
        %v408 = vadd.s32 %v407, %v405
        %v409 = vadd.s32 %v407, %v406
        %vm410 = vcmp.ge.s32.totalorder %v408, 0
        %vm411 = vcmp.ge.s32.totalorder %v409, 0
        %vm412 = vcmp.lt.s32.totalorder %v408, 32
        %vm413 = vcmp.lt.s32.totalorder %v409, 32
        %vm414 = vmand %vm410, %vm412
        %vm415 = vmand %vm411, %vm413
        %v416 = vsel %vm414, 1, 0
        %v417 = vsel %vm415, 1, 0
        %vm418 = vcmp.eq.s32.totalorder %v416, 1
        %vm419 = vcmp.eq.s32.totalorder %v417, 1
        %v420 = vsel %vm418, %v401, 0.0
        %v421 = vsel %vm419, %v402, 0.0
        %v422 = vld [vmem:[%s5] sm:$0xff]
        %v423 = vld [vmem:[%s4] sm:$0xff]
        %s424 = scalar_lea.vmem %s4, 8
        %v425 = vld [vmem:[%s424] sm:$0xff]
        %s426 = scalar_lea.vmem %s4, 16
        %v427 = vld [vmem:[%s426] sm:$0xff]
        %429 = vrot.lane.b32.xlu0 %v425, 8
        %v430 = vpop.permute.xlu0 %429
        %433 = vrot.lane.b32.xlu0 %v427, 16
        %v434 = vpop.permute.xlu0 %433
        %v436 = vsel %vm326, %v423, %v430
        %v437 = vsel %vm328, %v436, %v434
        %440 = vrot.lane.b32.xlu0 %v420, 127
        %v441 = vpop.permute.xlu0 %440
        %442 = vrot.lane.b32.xlu0 %v421, 127
        %v443 = vpop.permute.xlu0 %442
        %v444 = vsel %vm336, %v441, %v443
        %447 = vrot.lane.b32.xlu0 %v420, 126
        %v448 = vpop.permute.xlu0 %447
        %449 = vrot.lane.b32.xlu0 %v421, 126
        %v450 = vpop.permute.xlu0 %449
        %v451 = vsel %vm344, %v448, %v450
        %455 = vset.pattern.permute.xlu0 0
        %456 = vperm.xlu0 %455, %v422
        %v457 = vpop.permute.xlu0 %456
        %v460 = vsel %vm353, %v437, 0
        %462 = vmatpush.msra.mxu0 0.0
        %463 = vmatpush.msra.mxu0 0.0
        %464 = vmatpush.msra.mxu0 0.0
        %465 = vmatpush.msra.mxu0 0.0
        %466 = vmatpush.msra.mxu0 0.0
        %467 = vmatpush.msra.mxu0 0.0
        %468 = vmatpush.msra.mxu0 0.0
        %469 = vmatpush.msra.mxu0 0.0
        %470 = vmatpush.msra.mxu0 0.0
        %471 = vmatpush.msra.mxu0 0.0
        %472 = vmatpush.msra.mxu0 0.0
        %473 = vmatpush.msra.mxu0 0.0
        %474 = vmatpush.msra.mxu0 0.0
        %475 = vmatpush.msra.mxu0 %v451
        %476 = vmatpush.msra.mxu0 %v444
        %477 = vmatpush.msra.mxu0 %v420
        %478 = vmatmul.f32.gmra.mxu0 %v460
        %v479 = vpop.f32.mrf.mxu0
        %v480 = vadd.f32 %v457, %v479
        %481 = vdwg.mxu0
        %482 = vmatpush.msra.mxu0 0.0
        %483 = vmatpush.msra.mxu0 0.0
        %484 = vmatpush.msra.mxu0 0.0
        %485 = vmatpush.msra.mxu0 0.0
        %486 = vmatpush.msra.mxu0 0.0
        %487 = vmatpush.msra.mxu0 0.0
        %488 = vmatpush.msra.mxu0 0.0
        %489 = vmatpush.msra.mxu0 0.0
        %490 = vmatpush.msra.mxu0 0.0
        %491 = vmatpush.msra.mxu0 0.0
        %492 = vmatpush.msra.mxu0 0.0
        %493 = vmatpush.msra.mxu0 0.0
        %494 = vmatpush.msra.mxu0 0.0
        %495 = vmatpush.msra.mxu0 %v450
        %496 = vmatpush.msra.mxu0 %v443
        %497 = vmatpush.msra.mxu0 %v421
        %498 = vmatmul.f32.gmra.mxu0 %v460
        %v499 = vpop.f32.mrf.mxu0
        %v500 = vadd.f32 %v457, %v499
        %501 = vdwg.mxu0
        %504 = vrot.lane.b32.xlu0 %v303, 126
        %v505 = vpop.permute.xlu0 %504
        %506 = vrot.lane.b32.xlu0 %v304, 126
        %v507 = vpop.permute.xlu0 %506
        %v508 = vsel %vm344, %v505, %v507
        %v511 = vadd.f32 %v480, %v508
        %v512 = vadd.f32 %v500, %v507
        %s513 = sadd.s32 %s305, 4294967286
        %v514 = vstv %s513
        %v515 = vadd.s32 %v514, %v405
        %v516 = vadd.s32 %v514, %v406
        %vm517 = vcmp.ge.s32.totalorder %v515, 0
        %vm518 = vcmp.ge.s32.totalorder %v516, 0
        %vm519 = vcmp.lt.s32.totalorder %v515, 32
        %vm520 = vcmp.lt.s32.totalorder %v516, 32
        %vm521 = vmand %vm517, %vm519
        %vm522 = vmand %vm518, %vm520
        %v523 = vsel %vm521, 1, 0
        %v524 = vsel %vm522, 1, 0
        %vm525 = vcmp.eq.s32.totalorder %v523, 1
        %vm526 = vcmp.eq.s32.totalorder %v524, 1
        %v527 = vsel %vm525, %v511, 0.0
        %v528 = vsel %vm526, %v512, 0.0
        %vm529 = vcmp.gt.f32.partialorder %v527, 0.0
        %vm530 = vcmp.gt.f32.partialorder %v528, 0.0
        %v531 = vmul.f32 %v527, 0.1
        %v532 = vmul.f32 %v528, 0.1
        %v533 = vsel %vm529, %v527, %v531
        %v534 = vsel %vm530, %v528, %v532
        %s535 = scalar_lea.vmem %s3, 8
        %v536 = vld [vmem:[%s535] sm:$0xff]
        %s537 = scalar_lea.vmem %s2, 24
        %v538 = vld [vmem:[%s537] sm:$0xff]
        %s539 = scalar_lea.vmem %s2, 32
        %v540 = vld [vmem:[%s539] sm:$0xff]
        %s541 = scalar_lea.vmem %s2, 40
        %v542 = vld [vmem:[%s541] sm:$0xff]
        %544 = vrot.lane.b32.xlu0 %v540, 8
        %v545 = vpop.permute.xlu0 %544
        %548 = vrot.lane.b32.xlu0 %v542, 16
        %v549 = vpop.permute.xlu0 %548
        %v551 = vsel %vm326, %v538, %v545
        %v552 = vsel %vm328, %v551, %v549
        %555 = vrot.lane.b32.xlu0 %v533, 125
        %v556 = vpop.permute.xlu0 %555
        %557 = vrot.lane.b32.xlu0 %v534, 125
        %v558 = vpop.permute.xlu0 %557
        %vm559 = vcmask 1022976
        %v560 = vsel %vm559, %v556, %v558
        %563 = vrot.lane.b32.xlu0 %v533, 122
        %v564 = vpop.permute.xlu0 %563
        %565 = vrot.lane.b32.xlu0 %v534, 122
        %v566 = vpop.permute.xlu0 %565
        %vm567 = vcmask 998400
        %v568 = vsel %vm567, %v564, %v566
        %572 = vset.pattern.permute.xlu0 0
        %573 = vperm.xlu0 %572, %v536
        %v574 = vpop.permute.xlu0 %573
        %v577 = vsel %vm353, %v552, 0
        %579 = vmatpush.msra.mxu0 0.0
        %580 = vmatpush.msra.mxu0 0.0
        %581 = vmatpush.msra.mxu0 0.0
        %582 = vmatpush.msra.mxu0 0.0
        %583 = vmatpush.msra.mxu0 0.0
        %584 = vmatpush.msra.mxu0 0.0
        %585 = vmatpush.msra.mxu0 0.0
        %586 = vmatpush.msra.mxu0 0.0
        %587 = vmatpush.msra.mxu0 0.0
        %588 = vmatpush.msra.mxu0 0.0
        %589 = vmatpush.msra.mxu0 0.0
        %590 = vmatpush.msra.mxu0 0.0
        %591 = vmatpush.msra.mxu0 0.0
        %592 = vmatpush.msra.mxu0 %v568
        %593 = vmatpush.msra.mxu0 %v560
        %594 = vmatpush.msra.mxu0 %v533
        %595 = vmatmul.f32.gmra.mxu0 %v577
        %v596 = vpop.f32.mrf.mxu0
        %v597 = vadd.f32 %v574, %v596
        %598 = vdwg.mxu0
        %599 = vmatpush.msra.mxu0 0.0
        %600 = vmatpush.msra.mxu0 0.0
        %601 = vmatpush.msra.mxu0 0.0
        %602 = vmatpush.msra.mxu0 0.0
        %603 = vmatpush.msra.mxu0 0.0
        %604 = vmatpush.msra.mxu0 0.0
        %605 = vmatpush.msra.mxu0 0.0
        %606 = vmatpush.msra.mxu0 0.0
        %607 = vmatpush.msra.mxu0 0.0
        %608 = vmatpush.msra.mxu0 0.0
        %609 = vmatpush.msra.mxu0 0.0
        %610 = vmatpush.msra.mxu0 0.0
        %611 = vmatpush.msra.mxu0 0.0
        %612 = vmatpush.msra.mxu0 %v566
        %613 = vmatpush.msra.mxu0 %v558
        %614 = vmatpush.msra.mxu0 %v534
        %615 = vmatmul.f32.gmra.mxu0 %v577
        %v616 = vpop.f32.mrf.mxu0
        %v617 = vadd.f32 %v574, %v616
        %618 = vdwg.mxu0
        %vm619 = vcmp.gt.f32.partialorder %v597, 0.0
        %vm620 = vcmp.gt.f32.partialorder %v617, 0.0
        %v621 = vmul.f32 %v597, 0.1
        %v622 = vmul.f32 %v617, 0.1
        %v623 = vsel %vm619, %v597, %v621
        %v624 = vsel %vm620, %v617, %v622
        %s625 = sadd.s32 %s305, 4294967289
        %v626 = vstv %s625
        %v627 = vadd.s32 %v626, %v405
        %v628 = vadd.s32 %v626, %v406
        %vm629 = vcmp.ge.s32.totalorder %v627, 0
        %vm630 = vcmp.ge.s32.totalorder %v628, 0
        %vm631 = vcmp.lt.s32.totalorder %v627, 32
        %vm632 = vcmp.lt.s32.totalorder %v628, 32
        %vm633 = vmand %vm629, %vm631
        %vm634 = vmand %vm630, %vm632
        %v635 = vsel %vm633, 1, 0
        %v636 = vsel %vm634, 1, 0
        %vm637 = vcmp.eq.s32.totalorder %v635, 1
        %vm638 = vcmp.eq.s32.totalorder %v636, 1
        %v639 = vsel %vm637, %v623, 0.0
        %v640 = vsel %vm638, %v624, 0.0
        %s641 = scalar_lea.vmem %s5, 8
        %v642 = vld [vmem:[%s641] sm:$0xff]
        %s643 = scalar_lea.vmem %s4, 24
        %v644 = vld [vmem:[%s643] sm:$0xff]
        %s645 = scalar_lea.vmem %s4, 32
        %v646 = vld [vmem:[%s645] sm:$0xff]
        %s647 = scalar_lea.vmem %s4, 40
        %v648 = vld [vmem:[%s647] sm:$0xff]
        %650 = vrot.lane.b32.xlu0 %v646, 8
        %v651 = vpop.permute.xlu0 %650
        %654 = vrot.lane.b32.xlu0 %v648, 16
        %v655 = vpop.permute.xlu0 %654
        %v657 = vsel %vm326, %v644, %v651
        %v658 = vsel %vm328, %v657, %v655
        %661 = vrot.lane.b32.xlu0 %v639, 127
        %v662 = vpop.permute.xlu0 %661
        %663 = vrot.lane.b32.xlu0 %v640, 127
        %v664 = vpop.permute.xlu0 %663
        %v665 = vsel %vm336, %v662, %v664
        %668 = vrot.lane.b32.xlu0 %v639, 126
        %v669 = vpop.permute.xlu0 %668
        %670 = vrot.lane.b32.xlu0 %v640, 126
        %v671 = vpop.permute.xlu0 %670
        %v672 = vsel %vm344, %v669, %v671
        %676 = vset.pattern.permute.xlu0 0
        %677 = vperm.xlu0 %676, %v642
        %v678 = vpop.permute.xlu0 %677
        %v681 = vsel %vm353, %v658, 0
        %683 = vmatpush.msra.mxu0 0.0
        %684 = vmatpush.msra.mxu0 0.0
        %685 = vmatpush.msra.mxu0 0.0
        %686 = vmatpush.msra.mxu0 0.0
        %687 = vmatpush.msra.mxu0 0.0
        %688 = vmatpush.msra.mxu0 0.0
        %689 = vmatpush.msra.mxu0 0.0
        %690 = vmatpush.msra.mxu0 0.0
        %691 = vmatpush.msra.mxu0 0.0
        %692 = vmatpush.msra.mxu0 0.0
        %693 = vmatpush.msra.mxu0 0.0
        %694 = vmatpush.msra.mxu0 0.0
        %695 = vmatpush.msra.mxu0 0.0
        %696 = vmatpush.msra.mxu0 %v672
        %697 = vmatpush.msra.mxu0 %v665
        %698 = vmatpush.msra.mxu0 %v639
        %699 = vmatmul.f32.gmra.mxu0 %v681
        %v700 = vpop.f32.mrf.mxu0
        %v701 = vadd.f32 %v678, %v700
        %702 = vdwg.mxu0
        %703 = vmatpush.msra.mxu0 0.0
        %704 = vmatpush.msra.mxu0 0.0
        %705 = vmatpush.msra.mxu0 0.0
        %706 = vmatpush.msra.mxu0 0.0
        %707 = vmatpush.msra.mxu0 0.0
        %708 = vmatpush.msra.mxu0 0.0
        %709 = vmatpush.msra.mxu0 0.0
        %710 = vmatpush.msra.mxu0 0.0
        %711 = vmatpush.msra.mxu0 0.0
        %712 = vmatpush.msra.mxu0 0.0
        %713 = vmatpush.msra.mxu0 0.0
        %714 = vmatpush.msra.mxu0 0.0
        %715 = vmatpush.msra.mxu0 0.0
        %716 = vmatpush.msra.mxu0 %v671
        %717 = vmatpush.msra.mxu0 %v664
        %718 = vmatpush.msra.mxu0 %v640
        %719 = vmatmul.f32.gmra.mxu0 %v681
        %v720 = vpop.f32.mrf.mxu0
        %v721 = vadd.f32 %v678, %v720
        %722 = vdwg.mxu0
        %725 = vrot.lane.b32.xlu0 %v527, 124
        %v726 = vpop.permute.xlu0 %725
        %727 = vrot.lane.b32.xlu0 %v528, 124
        %v728 = vpop.permute.xlu0 %727
        %vm729 = vcmask 1014784
        %v730 = vsel %vm729, %v726, %v728
        %v733 = vadd.f32 %v701, %v730
        %v734 = vadd.f32 %v721, %v728
        %s735 = sadd.s32 %s305, 4294967290
        %v736 = vstv %s735
        %v737 = vadd.s32 %v736, %v405
        %v738 = vadd.s32 %v736, %v406
        %vm739 = vcmp.ge.s32.totalorder %v737, 0
        %vm740 = vcmp.ge.s32.totalorder %v738, 0
        %vm741 = vcmp.lt.s32.totalorder %v737, 32
        %vm742 = vcmp.lt.s32.totalorder %v738, 32
        %vm743 = vmand %vm739, %vm741
        %vm744 = vmand %vm740, %vm742
        %v745 = vsel %vm743, 1, 0
        %v746 = vsel %vm744, 1, 0
        %vm747 = vcmp.eq.s32.totalorder %v745, 1
        %vm748 = vcmp.eq.s32.totalorder %v746, 1
        %v749 = vsel %vm747, %v733, 0.0
        %v750 = vsel %vm748, %v734, 0.0
        %vm751 = vcmp.gt.f32.partialorder %v749, 0.0
        %vm752 = vcmp.gt.f32.partialorder %v750, 0.0
        %v753 = vmul.f32 %v749, 0.1
        %v754 = vmul.f32 %v750, 0.1
        %v755 = vsel %vm751, %v749, %v753
        %v756 = vsel %vm752, %v750, %v754
        %s757 = scalar_lea.vmem %s3, 16
        %v758 = vld [vmem:[%s757] sm:$0xff]
        %s759 = scalar_lea.vmem %s2, 48
        %v760 = vld [vmem:[%s759] sm:$0xff]
        %s761 = scalar_lea.vmem %s2, 56
        %v762 = vld [vmem:[%s761] sm:$0xff]
        %s763 = scalar_lea.vmem %s2, 64
        %v764 = vld [vmem:[%s763] sm:$0xff]
        %766 = vrot.lane.b32.xlu0 %v762, 8
        %v767 = vpop.permute.xlu0 %766
        %770 = vrot.lane.b32.xlu0 %v764, 16
        %v771 = vpop.permute.xlu0 %770
        %v773 = vsel %vm326, %v760, %v767
        %v774 = vsel %vm328, %v773, %v771
        %777 = vrot.lane.b32.xlu0 %v755, 123
        %v778 = vpop.permute.xlu0 %777
        %779 = vrot.lane.b32.xlu0 %v756, 123
        %v780 = vpop.permute.xlu0 %779
        %vm781 = vcmask 1006592
        %v782 = vsel %vm781, %v778, %v780
        %785 = vrot.lane.b32.xlu0 %v755, 118
        %v786 = vpop.permute.xlu0 %785
        %787 = vrot.lane.b32.xlu0 %v756, 118
        %v788 = vpop.permute.xlu0 %787
        %vm789 = vcmask 965632
        %v790 = vsel %vm789, %v786, %v788
        %794 = vset.pattern.permute.xlu0 0
        %795 = vperm.xlu0 %794, %v758
        %v796 = vpop.permute.xlu0 %795
        %v799 = vsel %vm353, %v774, 0
        %801 = vmatpush.msra.mxu0 0.0
        %802 = vmatpush.msra.mxu0 0.0
        %803 = vmatpush.msra.mxu0 0.0
        %804 = vmatpush.msra.mxu0 0.0
        %805 = vmatpush.msra.mxu0 0.0
        %806 = vmatpush.msra.mxu0 0.0
        %807 = vmatpush.msra.mxu0 0.0
        %808 = vmatpush.msra.mxu0 0.0
        %809 = vmatpush.msra.mxu0 0.0
        %810 = vmatpush.msra.mxu0 0.0
        %811 = vmatpush.msra.mxu0 0.0
        %812 = vmatpush.msra.mxu0 0.0
        %813 = vmatpush.msra.mxu0 0.0
        %814 = vmatpush.msra.mxu0 %v790
        %815 = vmatpush.msra.mxu0 %v782
        %816 = vmatpush.msra.mxu0 %v755
        %817 = vmatmul.f32.gmra.mxu0 %v799
        %v818 = vpop.f32.mrf.mxu0
        %v819 = vadd.f32 %v796, %v818
        %820 = vdwg.mxu0
        %821 = vmatpush.msra.mxu0 0.0
        %822 = vmatpush.msra.mxu0 0.0
        %823 = vmatpush.msra.mxu0 0.0
        %824 = vmatpush.msra.mxu0 0.0
        %825 = vmatpush.msra.mxu0 0.0
        %826 = vmatpush.msra.mxu0 0.0
        %827 = vmatpush.msra.mxu0 0.0
        %828 = vmatpush.msra.mxu0 0.0
        %829 = vmatpush.msra.mxu0 0.0
        %830 = vmatpush.msra.mxu0 0.0
        %831 = vmatpush.msra.mxu0 0.0
        %832 = vmatpush.msra.mxu0 0.0
        %833 = vmatpush.msra.mxu0 0.0
        %834 = vmatpush.msra.mxu0 %v788
        %835 = vmatpush.msra.mxu0 %v780
        %836 = vmatpush.msra.mxu0 %v756
        %837 = vmatmul.f32.gmra.mxu0 %v799
        %v838 = vpop.f32.mrf.mxu0
        %v839 = vadd.f32 %v796, %v838
        %840 = vdwg.mxu0
        %vm841 = vcmp.gt.f32.partialorder %v819, 0.0
        %vm842 = vcmp.gt.f32.partialorder %v839, 0.0
        %v843 = vmul.f32 %v819, 0.1
        %v844 = vmul.f32 %v839, 0.1
        %v845 = vsel %vm841, %v819, %v843
        %v846 = vsel %vm842, %v839, %v844
        %s847 = sadd.s32 %s305, 4294967295
        %v848 = vstv %s847
        %v849 = vadd.s32 %v848, %v405
        %v850 = vadd.s32 %v848, %v406
        %vm851 = vcmp.ge.s32.totalorder %v849, 0
        %vm852 = vcmp.ge.s32.totalorder %v850, 0
        %vm853 = vcmp.lt.s32.totalorder %v849, 32
        %vm854 = vcmp.lt.s32.totalorder %v850, 32
        %vm855 = vmand %vm851, %vm853
        %vm856 = vmand %vm852, %vm854
        %v857 = vsel %vm855, 1, 0
        %v858 = vsel %vm856, 1, 0
        %vm859 = vcmp.eq.s32.totalorder %v857, 1
        %vm860 = vcmp.eq.s32.totalorder %v858, 1
        %v861 = vsel %vm859, %v845, 0.0
        %v862 = vsel %vm860, %v846, 0.0
        %s863 = scalar_lea.vmem %s5, 16
        %v864 = vld [vmem:[%s863] sm:$0xff]
        %s865 = scalar_lea.vmem %s4, 48
        %v866 = vld [vmem:[%s865] sm:$0xff]
        %s867 = scalar_lea.vmem %s4, 56
        %v868 = vld [vmem:[%s867] sm:$0xff]
        %s869 = scalar_lea.vmem %s4, 64
        %v870 = vld [vmem:[%s869] sm:$0xff]
        %872 = vrot.lane.b32.xlu0 %v868, 8
        %v873 = vpop.permute.xlu0 %872
        %876 = vrot.lane.b32.xlu0 %v870, 16
        %v877 = vpop.permute.xlu0 %876
        %v879 = vsel %vm326, %v866, %v873
        %v880 = vsel %vm328, %v879, %v877
        %883 = vrot.lane.b32.xlu0 %v861, 127
        %v884 = vpop.permute.xlu0 %883
        %885 = vrot.lane.b32.xlu0 %v862, 127
        %v886 = vpop.permute.xlu0 %885
        %v887 = vsel %vm336, %v884, %v886
        %889 = vrot.lane.b32.xlu0 %v861, 126
        %v890 = vpop.permute.xlu0 %889
        %891 = vrot.lane.b32.xlu0 %v862, 126
        %v892 = vpop.permute.xlu0 %891
        %v893 = vsel %vm344, %v890, %v892
        %896 = vset.pattern.permute.xlu0 0
        %897 = vperm.xlu0 %896, %v864
        %v898 = vpop.permute.xlu0 %897
        %v901 = vsel %vm353, %v880, 0
        %903 = vmatpush.msra.mxu0 0.0
        %904 = vmatpush.msra.mxu0 0.0
        %905 = vmatpush.msra.mxu0 0.0
        %906 = vmatpush.msra.mxu0 0.0
        %907 = vmatpush.msra.mxu0 0.0
        %908 = vmatpush.msra.mxu0 0.0
        %909 = vmatpush.msra.mxu0 0.0
        %910 = vmatpush.msra.mxu0 0.0
        %911 = vmatpush.msra.mxu0 0.0
        %912 = vmatpush.msra.mxu0 0.0
        %913 = vmatpush.msra.mxu0 0.0
        %914 = vmatpush.msra.mxu0 0.0
        %915 = vmatpush.msra.mxu0 0.0
        %916 = vmatpush.msra.mxu0 %v893
        %917 = vmatpush.msra.mxu0 %v887
        %918 = vmatpush.msra.mxu0 %v861
        %919 = vmatmul.f32.gmra.mxu0 %v901
        %v920 = vpop.f32.mrf.mxu0
        %v921 = vadd.f32 %v898, %v920
        %922 = vdwg.mxu0
        %925 = vrot.lane.b32.xlu0 %v749, 122
        %v926 = vpop.permute.xlu0 %925
        %927 = vrot.lane.b32.xlu0 %v750, 122
        %v928 = vpop.permute.xlu0 %927
        %v929 = vsel %vm567, %v926, %v928
        %v931 = vadd.f32 %v921, %v929
        %932 = vst [vmem:[%s282] sm:$0xff] %v931
        %s933 = sand.u32 %s182, 1
        %s934 = scalar_lea.sflag [#allocation3], %s933
        %s935 = sand.u32 %s182, 1
        %s936 = smul.addr %s935, 8
        %s937 = scalar_lea.vmem [#allocation2], %s936
        // Predicated region
        $region45: #{tpu_custom_call.1} parent=43 // pred_check
          %p938 = pneg %p192
        $region46: #{tpu_custom_call.1} parent=43 // pred_check_branch
          %940 = sbr.rel (%p938) target = $region48
        $region47: #{tpu_custom_call.1} parent=43 // pred_region
          %942 = vsyncadd %s934, 0
          %s943 = sadd.s32 %s25, %s24
          %s944 = smul.addr %s943, 8
          %s945 = scalar_lea.hbm %s6, %s944
          %s947 = sshll.u32 %s937, 4
          %s948 = int_to_ptr.vmem [resolvable:$true] %s947
          %s949 = sshll.u32 %s945, 4
          %s950 = int_to_ptr.hbm [resolvable:$true] %s949
          %952 = dma.vmem_to_hbm [thread:$0]  %s948, 128, %s950, %s934
        $region48: #{tpu_custom_call.1} parent=43 // pred_fallthru
          _
      $region44: #{tpu_custom_call.1} parent=5 // pred_fallthru
        _
      %p953 = scmp.le.s32.totalorder 2, %s15
      // Predicated region
      $region49: #{tpu_custom_call.1} parent=5 // pred_check
        %p954 = pneg %p953
      $region50: #{tpu_custom_call.1} parent=5 // pred_check_branch
        %956 = sbr.rel (%p954) target = $region52
      $region51: #{tpu_custom_call.1} parent=5 // pred_region
        %s957 = ssub.s32 %s15, 2
        // Predicated region
        $region53: #{tpu_custom_call.1} parent=51 // pred_check
          %p958 = pneg %p198
        $region54: #{tpu_custom_call.1} parent=51 // pred_check_branch
          %960 = sbr.rel (%p958) target = $region56
        $region55: #{tpu_custom_call.1} parent=51 // pred_region
          %s961 = sand.u32 %s183, 1
          %s962 = scalar_lea.sflag [#allocation3], %s961
          %s963 = sand.u32 %s183, 1
          %s964 = smul.addr %s963, 8
          %s965 = scalar_lea.vmem [#allocation2], %s964
          %967 = dma.done %s962, 128
        $region56: #{tpu_custom_call.1} parent=51 // pred_fallthru
          _
      $region52: #{tpu_custom_call.1} parent=5 // pred_fallthru
        _
    $region6: #{tpu_custom_call.1} parent=1 // loop_footer
      %s19 = sadd.s32 1, %s15
    $region7: #{tpu_custom_call.1} parent=1 // loop_footer_branch
      %14 = sbr.rel target = $region3
    $region8: #{tpu_custom_call.1} parent=1 // loop_exit
      _
    %968 = vsyncpa [#allocation3], 1
    %s969 = scalar_lea.sflag [#allocation3], 1
    %970 = vsyncpa %s969, 1

</llo_original>
